<compile_context>
chip_gen: v6e
topology: v6e:2x2x1
jax: 0.10.0
libtpu: 0.0.40
codegen_flags: <defaults>
</compile_context>

<pallas_src>
import jax
import jax.numpy as jnp
from jax.experimental import pallas as pl
from jax.experimental.pallas import tpu as pltpu


_VMEM_LIMIT_BYTES = 32 * 1024 * 1024  # scoped VMEM we request (safe on v5e/v6e/v7x)


# ------------------------------- kernels -------------------------------

def _concat_lane_dense_kernel(noisy_ref, cond_ref, out_ref):
    """Channel concat viewed as a last-dim concat of two lane-dense slabs.

    Only used when N1 = C1*L*J is a multiple of 128, so both stores are
    unmasked, lane-aligned full-width stores (no XLU relayout, no vst.msk).
    """
    n1 = noisy_ref.shape[1]
    out_ref[:, :n1] = noisy_ref[...]
    out_ref[:, n1:] = cond_ref[...]


def _concat_dma_kernel(noisy_hbm, cond_hbm, out_hbm, sem):
    """Pure HBM->HBM DMA concat along the channel dim (alignment-agnostic).

    Used when the lane offset would be misaligned (e.g. J=17): the data never
    round-trips through VMEM/vregs. Two overlapping DMAs:
        noisy -> out[:, :C1, :, :]      cond -> out[:, C1:, :, :]
    """
    c1 = noisy_hbm.shape[1]
    c2 = cond_hbm.shape[1]
    cp1 = pltpu.make_async_copy(noisy_hbm, out_hbm.at[:, :c1], sem.at[0])
    cp2 = pltpu.make_async_copy(cond_hbm, out_hbm.at[:, c1:c1 + c2], sem.at[1])
    cp1.start()
    cp2.start()
    cp1.wait()
    cp2.wait()


def _sum_kernel(noisy_ref, cond_ref, out_ref):
    """Elementwise sum (mix_mode='sum')."""
    out_ref[...] = noisy_ref[...] + cond_ref[...]


# ---------------------------- tiling helpers ----------------------------

def _round_up(x, m):
    return ((x + m - 1) // m) * m


def _num_tensorcores():
    """Best-effort count of TensorCores addressable by one Pallas call."""
    try:
        dev = jax.devices()[0]
        kind = str(getattr(dev, "device_kind", "")).lower()
        # v4 / v5p megacore and TPU7x expose 2 TensorCores per Pallas device;
        # v2/v3/v5e/v6e expose 1.
        if ("v4" in kind) or ("v5p" in kind) or ("7" in kind):
            return 2
        nc = getattr(dev, "num_cores", None)
        if isinstance(nc, int) and nc >= 1:
            return nc
    except Exception:
        pass
    return 1


def _pick_batch_tile(B, bytes_per_row, dtype, num_tc):
    """Rows of the flattened (B, N) arrays to process per grid step.

    Returns None if even the smallest legal tile would blow the VMEM budget
    (caller falls back to plain XLA ops).
    """
    itemsize = jnp.dtype(dtype).itemsize
    # Sub-32-bit dtypes pack along sublanes: 8 rows f32, 16 bf16, 32 int8/fp8.
    sub = max(8, 32 // max(1, itemsize))

    # Smallest legal tile already too big (huge rows)? -> bail out.
    if bytes_per_row * min(B, sub) * 2 > _VMEM_LIMIT_BYTES:
        return None

    # Resident tile bytes per grid step; Pallas double-buffers, so the VMEM
    # footprint is ~2x this. Slightly smaller budget on 2-TC chips (v7x has
    # only 64 MiB VMEM per TC).
    budget = (12 if num_tc >= 2 else 14) * 1024 * 1024
    rows_cap = max(sub, (budget // max(1, bytes_per_row)) // sub * sub)

    if num_tc <= 1 or B <= sub:
        # Single TensorCore (v5e/v6e) or tiny batch: fewest grid steps wins —
        # each step costs ~0.35us fixed overhead and there is nothing to shard.
        return min(B, rows_cap)

    # Two TensorCores (v7x / megacore): keep an even number of roughly equal
    # grid steps so both cores get the same amount of work (odd step counts
    # leave one core with a ~whole extra step of tail).
    steps = 2
    while _round_up(pl.cdiv(B, steps), sub) > rows_cap:
        steps += 2
    return min(B, _round_up(pl.cdiv(B, steps), sub))


# ------------------------------- wrapper -------------------------------

def uv_cond_forward(noisy_data, data_2d, mix_mode="concat", p_uncond=0.0,
                    donate_noisy=False, batch_tile=None, force_pallas=False,
                    xla_fallback_below_bytes=1 << 20):
    """JAX/Pallas equivalent of UVCond.forward / mix_data_with_condition.

    noisy_data: (B, C1, L, J)  e.g. 3 channels (xyz) of the noisy 3D pose
    data_2d:    (B, C2, L, J)  e.g. 2 channels (u,v) of the 2D condition
    """
    # apply_guidance(data_2d, p_uncond) is the identity when p_uncond == 0.0.
    # TODO(synk): stochastic condition dropout (p_uncond > 0) is not defined in
    #             the reference snippet; only the p_uncond == 0.0 path exists.
    if p_uncond != 0.0:
        raise NotImplementedError("Only p_uncond=0.0 is supported in this kernel.")

    if mix_mode not in ("concat", "z_only", "sum"):
        raise ValueError(
            "Accepted mix_mode values are 'sum', 'concat' and 'z_only'."
            f" Got {mix_mode}.")

    B, C1, L, J = noisy_data.shape
    Bc, C2, Lc, Jc = data_2d.shape
    assert (B, L, J) == (Bc, Lc, Jc), (noisy_data.shape, data_2d.shape)

    dtype = jnp.result_type(noisy_data.dtype, data_2d.dtype)
    noisy_data = noisy_data.astype(dtype)
    data_2d = data_2d.astype(dtype)
    itemsize = jnp.dtype(dtype).itemsize

    N1, N2 = C1 * L * J, C2 * L * J
    concat_mode = mix_mode in ("concat", "z_only")
    # NOTE: per the reference, 'z_only' concatenates exactly like 'concat'
    # (only the module's out_dim attribute differs).
    if concat_mode:
        C_out, N_out = C1 + C2, N1 + N2
    else:
        assert noisy_data.shape == data_2d.shape, (
            "noisy_data and data_2d need to have the same size to be summed."
            f" Got {noisy_data.shape} and {data_2d.shape}.")
        C_out, N_out = C1, N1

    # Tiny inputs: a kernel launch + one grid step dominates; let XLA handle it
    # (and fuse it into neighbours). Tests pass force_pallas=True.
    total_bytes = (noisy_data.size + data_2d.size) * itemsize
    if not force_pallas and total_bytes < xla_fallback_below_bytes:
        if concat_mode:
            return jnp.concatenate([noisy_data, data_2d], axis=1)
        return noisy_data + data_2d

    cost = pl.CostEstimate(
        flops=(B * N_out if mix_mode == "sum" else 0),
        transcendentals=0,
        bytes_accessed=(N1 + N2 + N_out) * B * itemsize)

    if concat_mode and (N1 % 128) != 0:
        # Lane-misaligned concat offset (common for J=17 pose skeletons): a
        # VMEM round-trip would force lane-shifted, masked stores every step.
        # Do two strided HBM->HBM DMAs instead (no VMEM, no vld/vst work).
        return pl.pallas_call(
            _concat_dma_kernel,
            out_shape=jax.ShapeDtypeStruct((B, C_out, L, J), dtype),
            in_specs=[pl.BlockSpec(memory_space=pl.ANY),
                      pl.BlockSpec(memory_space=pl.ANY)],
            out_specs=pl.BlockSpec(memory_space=pl.ANY),
            scratch_shapes=[pltpu.SemaphoreType.DMA((2,))],
            cost_estimate=cost,
        )(noisy_data, data_2d)

    # Lane-dense flat views: channel concat on row-major (B, C, L, J) is a
    # last-dim concat of per-batch flattened rows; 'sum' is elementwise.
    noisy_flat = noisy_data.reshape(B, N1)
    cond_flat = data_2d.reshape(B, N2)

    bytes_per_row = (N1 + N2 + N_out) * itemsize
    num_tc = _num_tensorcores()
    if batch_tile is not None:
        b_tile = max(1, min(int(batch_tile), B))
    else:
        b_tile = _pick_batch_tile(B, bytes_per_row, dtype, num_tc)

    if b_tile is None:
        # Even the smallest legal tile would blow the VMEM budget; fall back.
        if concat_mode:
            return jnp.concatenate([noisy_data, data_2d], axis=1)
        return noisy_data + data_2d

    grid = (pl.cdiv(B, b_tile),)
    kernel = _concat_lane_dense_kernel if concat_mode else _sum_kernel

    extra = {}
    if donate_noisy and mix_mode == "sum":
        # Write the sum back into (an alias of) noisy_data's buffer; only
        # effective if the caller actually donates it to the enclosing jit.
        extra["input_output_aliases"] = {0: 0}

    out_flat = pl.pallas_call(
        kernel,
        out_shape=jax.ShapeDtypeStruct((B, N_out), dtype),
        grid=grid,
        in_specs=[
            pl.BlockSpec((b_tile, N1), lambda b: (b, 0)),
            pl.BlockSpec((b_tile, N2), lambda b: (b, 0)),
        ],
        out_specs=pl.BlockSpec((b_tile, N_out), lambda b: (b, 0)),
        compiler_params=pltpu.CompilerParams(
            dimension_semantics=("parallel",),
            vmem_limit_bytes=_VMEM_LIMIT_BYTES),
        cost_estimate=cost,
        **extra,
    )(noisy_flat, cond_flat)

    return out_flat.reshape(B, C_out, L, J)


# --------------------------------- test ---------------------------------

if __name__ == "__main__":
    key = jax.random.PRNGKey(0)
    k1, k2, k3, k4, k5 = jax.random.split(key, 5)

    # noisy 3D pose: (B=2, C=3, L=16 frames, J=16 joints); 2D cond: (B=2, C=2, L, J)
    B, L, J = 2, 16, 16
    noisy = jax.random.normal(k1, (B, 3, L, J), dtype=jnp.float32)
    cond = jax.random.normal(k2, (B, 2, L, J), dtype=jnp.float32)
    ref = jnp.concatenate([noisy, cond], axis=1)

    # 1) concat, lane-aligned (N1 = 3*16*16 = 768, multiple of 128) -> VMEM path.
    out = jax.block_until_ready(
        uv_cond_forward(noisy, cond, mix_mode="concat", p_uncond=0.0,
                        force_pallas=True))
    assert out.shape == (B, 5, L, J), out.shape
    assert jnp.array_equal(out, ref), "concat mismatch"

    # 2) z_only behaves identically to concat (per reference code).
    out_z = jax.block_until_ready(
        uv_cond_forward(noisy, cond, mix_mode="z_only", force_pallas=True))
    assert jnp.array_equal(out_z, ref), "z_only mismatch"

    # 3) sum (same-shape inputs).
    cond3 = jax.random.normal(k3, (B, 3, L, J), dtype=jnp.float32)
    out_s = jax.block_until_ready(
        uv_cond_forward(noisy, cond3, mix_mode="sum", force_pallas=True))
    assert out_s.shape == (B, 3, L, J), out_s.shape
    assert jnp.allclose(out_s, noisy + cond3), "sum mismatch"

    # 4) multi-step grid with a ragged last block (B=11, tile=8).
    B2 = 11
    noisy2 = jax.random.normal(k4, (B2, 3, L, J), dtype=jnp.float32)
    cond2 = jax.random.normal(k5, (B2, 2, L, J), dtype=jnp.float32)
    out2 = jax.block_until_ready(
        uv_cond_forward(noisy2, cond2, mix_mode="concat", force_pallas=True,
                        batch_tile=8))
    assert jnp.array_equal(out2, jnp.concatenate([noisy2, cond2], axis=1)), \
        "ragged tiled concat mismatch"

    # 5) lane-misaligned concat (J=17 -> N1 = 816, not a multiple of 128):
    #    exercises the pure HBM->HBM DMA kernel.
    J2 = 17
    noisy3 = jax.random.normal(k1, (4, 3, L, J2), dtype=jnp.float32)
    cond4 = jax.random.normal(k2, (4, 2, L, J2), dtype=jnp.float32)
    out3 = jax.block_until_ready(
        uv_cond_forward(noisy3, cond4, mix_mode="concat", force_pallas=True))
    assert out3.shape == (4, 5, L, J2), out3.shape
    assert jnp.array_equal(out3, jnp.concatenate([noisy3, cond4], axis=1)), \
        "misaligned (DMA) concat mismatch"

    # 6) bf16 sum exercising dtype-aware sublane rounding.
    noisy_b = noisy.astype(jnp.bfloat16)
    cond_b = cond3.astype(jnp.bfloat16)
    out_b = jax.block_until_ready(
        uv_cond_forward(noisy_b, cond_b, mix_mode="sum", force_pallas=True))
    assert jnp.allclose(out_b.astype(jnp.float32),
                        (noisy_b + cond_b).astype(jnp.float32)), "bf16 sum mismatch"

    print("KERNEL_OK")
</pallas_src>

<mosaic_0001>
module attributes {stable_mosaic.version = 11 : i64} {
  func.func @_concat_lane_dense_kernel(%arg0: i32, %arg1: memref<2x768xf32, #tpu.memory_space<vmem>>, %arg2: memref<2x512xf32, #tpu.memory_space<vmem>>, %arg3: memref<2x1280xf32, #tpu.memory_space<vmem>>) attributes {dimension_semantics = [#tpu.dimension_semantics<parallel>], iteration_bounds = array<i64: 1>, scalar_prefetch = 0 : i64, scratch_operands = 0 : i64, tpu.core_type = #tpu.core_type<tc>, window_params = [{transform_indices = @transform_0, window_bounds = array<i64: 2, 768>}, {transform_indices = @transform_1, window_bounds = array<i64: 2, 512>}, {transform_indices = @transform_2, window_bounds = array<i64: 2, 1280>}]} {
    %c0 = arith.constant 0 : index
    %c0_0 = arith.constant 0 : index
    %0 = vector.load %arg1[%c0, %c0_0] : memref<2x768xf32, #tpu.memory_space<vmem>>, vector<2x768xf32>
    %c0_1 = arith.constant 0 : index
    %c0_2 = arith.constant 0 : index
    %1 = vector.load %arg3[%c0_1, %c0_2] : memref<2x1280xf32, #tpu.memory_space<vmem>>, vector<2x768xf32>
    tpu.vector_store %arg3[%c0_1, %c0_2], %0 {strides = array<i32>} : memref<2x1280xf32, #tpu.memory_space<vmem>>, vector<2x768xf32>,
    %c0_3 = arith.constant 0 : index
    %c0_4 = arith.constant 0 : index
    %2 = vector.load %arg2[%c0_3, %c0_4] : memref<2x512xf32, #tpu.memory_space<vmem>>, vector<2x512xf32>
    %c0_5 = arith.constant 0 : index
    %c768 = arith.constant 768 : index
    %3 = vector.load %arg3[%c0_5, %c768] : memref<2x1280xf32, #tpu.memory_space<vmem>>, vector<2x512xf32>
    tpu.vector_store %arg3[%c0_5, %c768], %2 {strides = array<i32>} : memref<2x1280xf32, #tpu.memory_space<vmem>>, vector<2x512xf32>,
    return
  }
  func.func @transform_0(%arg0: i32) -> (i32, i32) {
    %c0_i32 = arith.constant 0 : i32
    %c0_i32_0 = arith.constant 0 : i32
    return %arg0, %c0_i32 : i32, i32
  }
  func.func @transform_1(%arg0: i32) -> (i32, i32) {
    %c0_i32 = arith.constant 0 : i32
    %c0_i32_0 = arith.constant 0 : i32
    return %arg0, %c0_i32 : i32, i32
  }
  func.func @transform_2(%arg0: i32) -> (i32, i32) {
    %c0_i32 = arith.constant 0 : i32
    %c0_i32_0 = arith.constant 0 : i32
    return %arg0, %c0_i32 : i32, i32
  }
}

</mosaic_0001>

<llo_original>
// kernel: tpu_custom_call.1
$region0: #{tpu_custom_call.1}
  #allocation0 [shape = 'u32[]', space=smem, size = 0x4, offset = 0x4, fixed_abs, tag = 'smem constant byte address 0x4 - core index']
  #allocation1 [shape = 'u32[144,128]{1,0:T(1,128)}', space=vmem, size = 0x12000, scoped, tag = 'internal scratch']
  %s0 = inlined_call_operand.hbm [shape: f32[2,768], index: 0, kind: input, shape index: {}]
  %s1 = inlined_call_operand.hbm [shape: f32[2,512], index: 1, kind: input, shape index: {}]
  %s2 = inlined_call_operand.hbm [shape: f32[2,1280], index: 2, kind: output, shape index: {}]
  %s3 = sld [smem:[#allocation0]]
  $region26: #{tpu_custom_call.1} parent=0
    _
  %s5 = ssub.s32 1, %s3
  %s6 = scalar_select 0, %s5, %s3
  $region1: #{tpu_custom_call.1} parent=0
    #allocation2 [shape = 'u8[6144]{0}', space=vmem, size = 0x1800, scoped, tag = 'input window, operand 0, single buffered']
    #allocation3 [shape = 's32[1]{0}', space=sflag, size = 0x4, scoped, tag = 'scoped memory for tpu_custom_call.1']
    #allocation4 [shape = 's32[1]{0}', space=sflag, size = 0x4, scoped, tag = 'scoped memory for tpu_custom_call.1']
    #allocation5 [shape = 'u8[4096]{0}', space=vmem, size = 0x1000, scoped, tag = 'input window, operand 1, single buffered']
    #allocation6 [shape = 's32[1]{0}', space=sflag, size = 0x4, scoped, tag = 'scoped memory for tpu_custom_call.1']
    #allocation7 [shape = 'u8[10240]{0}', space=vmem, size = 0x2800, scoped, tag = 'output window, operand 0, single buffered']
    %7 = vsyncpa [#allocation3], 0
    %8 = vsyncpa [#allocation6], 0
    %9 = vsyncpa [#allocation4], 0
    // Predicated region
    $region2: #{tpu_custom_call.1} parent=1 // pred_check
      _
    $region3: #{tpu_custom_call.1} parent=1 // pred_check_branch
      %11 = sbr.rel (0) target = $region5
    $region4: #{tpu_custom_call.1} parent=1 // pred_region
      %s13 = ssub.s32 192, 192
      %14 = vsyncadd [#allocation3], %s13
      %s16 = sshll.u32 [#allocation2], 4
      %s17 = int_to_ptr.vmem [resolvable:$true] %s16
      %19 = dma.hbm_to_vmem [thread:$0]  %s0, 192, %s17, [#allocation3]
    $region5: #{tpu_custom_call.1} parent=1 // pred_fallthru
      _
    // Predicated region
    $region6: #{tpu_custom_call.1} parent=1 // pred_check
      _
    $region7: #{tpu_custom_call.1} parent=1 // pred_check_branch
      %21 = sbr.rel (0) target = $region9
    $region8: #{tpu_custom_call.1} parent=1 // pred_region
      %s23 = ssub.s32 128, 128
      %24 = vsyncadd [#allocation6], %s23
      %s26 = sshll.u32 [#allocation5], 4
      %s27 = int_to_ptr.vmem [resolvable:$true] %s26
      %29 = dma.hbm_to_vmem [thread:$0]  %s1, 128, %s27, [#allocation6]
    $region9: #{tpu_custom_call.1} parent=1 // pred_fallthru
      _
    // Predicated region
    $region10: #{tpu_custom_call.1} parent=1 // pred_check
      _
    $region11: #{tpu_custom_call.1} parent=1 // pred_check_branch
      %31 = sbr.rel (0) target = $region13
    $region12: #{tpu_custom_call.1} parent=1 // pred_region
      %32 = dma.done [#allocation3], 192
    $region13: #{tpu_custom_call.1} parent=1 // pred_fallthru
      _
    // Predicated region
    $region14: #{tpu_custom_call.1} parent=1 // pred_check
      _
    $region15: #{tpu_custom_call.1} parent=1 // pred_check_branch
      %34 = sbr.rel (0) target = $region17
    $region16: #{tpu_custom_call.1} parent=1 // pred_region
      %35 = dma.done [#allocation6], 128
    $region17: #{tpu_custom_call.1} parent=1 // pred_fallthru
      _
    %v36 = vld [vmem:[#allocation2] sm:$0xff]
    %v37 = vld [vmem:[#allocation2 + $0x8] sm:$0xf]
    %38 = vst [vmem:[#allocation7] sm:$0xff] %v36
    %39 = vst [vmem:[#allocation7 + $0x8] sm:$0xf] %v37
    %v40 = vld [vmem:[#allocation5] sm:$0xff]
    %41 = vst [vmem:[#allocation7 + $0xc] sm:$0xff] %v40
    // Predicated region
    $region18: #{tpu_custom_call.1} parent=1 // pred_check
      _
    $region19: #{tpu_custom_call.1} parent=1 // pred_check_branch
      %43 = sbr.rel (0) target = $region21
    $region20: #{tpu_custom_call.1} parent=1 // pred_region
      %s45 = ssub.s32 320, 320
      %46 = vsyncadd [#allocation4], %s45
      %s48 = sshll.u32 [#allocation7], 4
      %s49 = int_to_ptr.vmem [resolvable:$true] %s48
      %51 = dma.vmem_to_hbm [thread:$0]  %s49, 320, %s2, [#allocation4]
    $region21: #{tpu_custom_call.1} parent=1 // pred_fallthru
      _
    // Predicated region
    $region22: #{tpu_custom_call.1} parent=1 // pred_check
      _
    $region23: #{tpu_custom_call.1} parent=1 // pred_check_branch
      %53 = sbr.rel (0) target = $region25
    $region24: #{tpu_custom_call.1} parent=1 // pred_region
      %54 = dma.done [#allocation4], 320
    $region25: #{tpu_custom_call.1} parent=1 // pred_fallthru
      _
    %55 = vsyncpa [#allocation3], 1
    %56 = vsyncpa [#allocation6], 1
    %57 = vsyncpa [#allocation4], 1

</llo_original>
